<compile_context>
chip_gen: v5e
topology: v5e:2x2
jax: 0.10.0
libtpu: 0.0.40
codegen_flags: <defaults>
</compile_context>

<pallas_src>
import math

import jax
import jax.numpy as jnp
from jax.experimental import pallas as pl
from jax.experimental.pallas import tpu as pltpu

_MiB = 1024 * 1024
_SUBBYTE_DTYPES = ("int4", "uint4", "int2", "uint2", "float4_e2m1fn")


def _copy_kernel(x_ref, o_ref):
    # Identity copy of the current tile (all the "work" a materialized view has).
    o_ref[...] = x_ref[...]


def _vmem_budget():
    """(max_block_bytes, vmem_limit_bytes) derived from this chip's VMEM."""
    try:
        vmem_cap = int(getattr(pltpu.get_tpu_info(), "vmem_capacity_bytes",
                               64 * _MiB))
    except Exception:  # conservative default sized for v7x's 64 MiB VMEM
        vmem_cap = 64 * _MiB
    max_block_bytes = min(8 * _MiB, max(_MiB, vmem_cap // 16))
    vmem_limit = min(vmem_cap // 2, max(16 * _MiB, 6 * max_block_bytes))
    return max_block_bytes, vmem_limit


def _choose_cols(total, itemsize, min_sublane, max_block_bytes):
    """Widest divisor of `total` to use as the lane (last) dimension."""
    max_cols = min(8192, max(128, max_block_bytes // (min_sublane * itemsize)))
    max_cols = (max_cols // 128) * 128
    # Preferred: a lane-dense (multiple-of-128) divisor -> fully unmasked stores.
    c = min(max_cols, (total // 128) * 128)
    while c >= 128:
        if total % c == 0:
            return c
        c -= 128
    # Ragged total: widest plain divisor.  cols == full array dim, so the
    # (8, 128) block constraint is satisfied via the full-dim exception; the
    # last partial lane group is masked but everything stays in ONE kernel.
    # TODO(synk): a chunked HBM->HBM DMA path would avoid masked lanes for huge
    # near-prime totals; such sizes are vanishingly rare for .view().
    d = min(total, 8192)
    while d > 1:
        if total % d == 0:
            return d
        d -= 1
    return 1


def _pallas_flat_copy(x_flat, *, max_block_bytes=None, vmem_limit_bytes=None):
    """Materialize a fresh copy of a 1-D array with a single Pallas call."""
    total = int(x_flat.shape[0])
    if total == 0:
        return x_flat
    dtype = x_flat.dtype
    itemsize = jnp.dtype(dtype).itemsize
    # Full-density sublane tile per dtype: 8 (f32), 16 (bf16), 32 (int8/fp8).
    min_sublane = max(8, 32 // max(1, itemsize))

    auto_block, auto_limit = _vmem_budget()
    if max_block_bytes is None:
        max_block_bytes = auto_block
    if vmem_limit_bytes is None:
        vmem_limit_bytes = auto_limit

    cols = _choose_cols(total, itemsize, min_sublane, max_block_bytes)
    rows = total // cols

    target_rows = max(min_sublane, max_block_bytes // (itemsize * cols))
    target_rows = max(min_sublane, (target_rows // min_sublane) * min_sublane)

    if rows <= target_rows:
        block_rows = rows          # whole rows dim in one block (full-dim exception)
    else:
        block_rows = target_rows   # multiple of min_sublane; edge block auto-masked
    grid = (pl.cdiv(rows, block_rows),)

    x2d = x_flat.reshape(rows, cols)   # free metadata reshape (cols divides total)
    out2d = pl.pallas_call(
        _copy_kernel,
        out_shape=jax.ShapeDtypeStruct((rows, cols), dtype),
        grid_spec=pltpu.PrefetchScalarGridSpec(
            num_scalar_prefetch=0,
            grid=grid,
            in_specs=[pl.BlockSpec((block_rows, cols), lambda i: (i, 0))],
            out_specs=pl.BlockSpec((block_rows, cols), lambda i: (i, 0)),
        ),
        compiler_params=pltpu.CompilerParams(
            # "parallel" lets v7x shard the row grid across its 2 TensorCores.
            dimension_semantics=("parallel",),
            vmem_limit_bytes=int(vmem_limit_bytes),
        ),
    )(x2d)
    return out2d.reshape(total)


def _infer_shape(in_shape, target_shape):
    total = math.prod(in_shape) if len(in_shape) else 1
    shape = [int(s) for s in target_shape]
    if shape.count(-1) > 1:
        raise ValueError("only one dimension can be inferred (-1)")
    if -1 in shape:
        known = math.prod(s for s in shape if s != -1)
        if known == 0 or total % known != 0:
            raise ValueError(
                f"shape {tuple(target_shape)} is invalid for input of size {total}")
        shape[shape.index(-1)] = total // known
    if math.prod(shape) != total:
        raise ValueError(
            f"shape {tuple(target_shape)} is invalid for input of size {total}")
    return tuple(shape), total


def view(x, *shape, materialize=False, _max_block_bytes=None):
    """Equivalent of PyTorch View(*shape).forward(x).

    Default path is a pure metadata reshape (what a row-major .view costs in
    practice — zero bytes moved).  materialize=True forces a fresh buffer via
    the Pallas copy kernel.
    """
    # TODO(synk): torch .view errors on non-contiguous inputs; JAX arrays are
    # always logically contiguous, so that check has no equivalent here.
    out_shape, total = _infer_shape(x.shape, shape)

    if not materialize:
        return x.reshape(out_shape)

    if jnp.dtype(x.dtype).name in _SUBBYTE_DTYPES:
        # TODO(synk): sub-byte dtypes need packing-aware tiling; metadata-only.
        return x.reshape(out_shape)

    x_flat = x.reshape(total)                       # free row-major flatten
    y_flat = _pallas_flat_copy(x_flat, max_block_bytes=_max_block_bytes)
    return y_flat.reshape(out_shape)                # free final shape


if __name__ == "__main__":
    key = jax.random.PRNGKey(0)

    # 1) NCHW input: batch=2, channels=4, spatial=16x16 (f32, 2048 elements).
    x = jax.random.normal(key, (2, 4, 16, 16), dtype=jnp.float32)
    y_meta = view(x, 2, -1)                                  # metadata-only path
    y_mat = jax.block_until_ready(view(x, 2, -1, materialize=True))
    ref = x.reshape(2, -1)
    assert y_meta.shape == (2, 1024) and y_mat.shape == (2, 1024)
    assert y_mat.dtype == x.dtype
    assert bool(jnp.all(y_meta == ref)) and bool(jnp.all(y_mat == ref))

    # 2) bf16 with total = 17*128: widest lane-dense divisor (2176) is picked,
    #    single fully lane-dense block — no tail kernel, no concat.
    xb = jax.random.normal(key, (2, 4, 17, 16), dtype=jnp.bfloat16)
    yb = jax.block_until_ready(view(xb, -1, 16, materialize=True))
    assert yb.shape == (2 * 4 * 17, 16)
    assert bool(jnp.all(yb == xb.reshape(-1, 16)))

    # 3) Ragged total (1000 elements, not a multiple of 128): handled by ONE
    #    kernel via the widest-divisor cols (=1000) — no slices, no concat.
    xr = jax.random.normal(key, (2, 5, 10, 10), dtype=jnp.float32)
    yr = jax.block_until_ready(view(xr, 10, -1, materialize=True))
    assert yr.shape == (10, 100)
    assert bool(jnp.all(yr == xr.reshape(10, 100)))

    # 4) Force the multi-block pipelined grid (tiny block budget) including a
    #    ragged final row-block, exercising the cdiv grid + edge masking.
    xg = jax.random.normal(key, (2, 4, 21, 16), dtype=jnp.float32)   # 2688 elems
    yg = jax.block_until_ready(
        _pallas_flat_copy(xg.reshape(-1), max_block_bytes=8 * 1024))
    assert yg.shape == (2688,)
    assert bool(jnp.all(yg == xg.reshape(-1)))

    print("KERNEL_OK")
</pallas_src>

<mosaic_0001>
module attributes {stable_mosaic.version = 11 : i64} {
  func.func @_copy_kernel(%arg0: i32, %arg1: memref<1x2048xf32, #tpu.memory_space<vmem>>, %arg2: memref<1x2048xf32, #tpu.memory_space<vmem>>) attributes {dimension_semantics = [#tpu.dimension_semantics<parallel>], iteration_bounds = array<i64: 1>, scalar_prefetch = 0 : i64, scratch_operands = 0 : i64, tpu.core_type = #tpu.core_type<tc>, window_params = [{transform_indices = @transform_0, window_bounds = array<i64: 1, 2048>}, {transform_indices = @transform_1, window_bounds = array<i64: 1, 2048>}]} {
    %c0 = arith.constant 0 : index
    %c0_0 = arith.constant 0 : index
    %0 = vector.load %arg1[%c0, %c0_0] : memref<1x2048xf32, #tpu.memory_space<vmem>>, vector<1x2048xf32>
    %c0_1 = arith.constant 0 : index
    %c0_2 = arith.constant 0 : index
    %1 = vector.load %arg2[%c0_1, %c0_2] : memref<1x2048xf32, #tpu.memory_space<vmem>>, vector<1x2048xf32>
    tpu.vector_store %arg2[%c0_1, %c0_2], %0 {strides = array<i32>} : memref<1x2048xf32, #tpu.memory_space<vmem>>, vector<1x2048xf32>,
    return
  }
  func.func @transform_0(%arg0: i32) -> (i32, i32) {
    %c0_i32 = arith.constant 0 : i32
    %c0_i32_0 = arith.constant 0 : i32
    return %arg0, %c0_i32 : i32, i32
  }
  func.func @transform_1(%arg0: i32) -> (i32, i32) {
    %c0_i32 = arith.constant 0 : i32
    %c0_i32_0 = arith.constant 0 : i32
    return %arg0, %c0_i32 : i32, i32
  }
}

</mosaic_0001>

<llo_original>
// kernel: tpu_custom_call.1
$region0: #{tpu_custom_call.1}
  #allocation0 [shape = 'u32[]', space=smem, size = 0x4, offset = 0x4, fixed_abs, tag = 'smem constant byte address 0x4 - core index']
  #allocation1 [shape = 'u32[72,128]{1,0:T(1,128)}', space=vmem, size = 0x9000, scoped, tag = 'internal scratch']
  %s0 = inlined_call_operand.hbm [shape: f32[1,2048], index: 0, kind: input, shape index: {}]
  %s1 = inlined_call_operand.hbm [shape: f32[1,2048], index: 1, kind: output, shape index: {}]
  %s2 = sld [smem:[#allocation0]]
  $region18: #{tpu_custom_call.1} parent=0
    _
  %s4 = ssub.s32 1, %s2
  %s5 = scalar_select 0, %s4, %s2
  $region1: #{tpu_custom_call.1} parent=0
    #allocation2 [shape = 'u8[8192]{0}', space=vmem, size = 0x2000, scoped, tag = 'input window, operand 0, single buffered']
    #allocation3 [shape = 's32[1]{0}', space=sflag, size = 0x4, scoped, tag = 'scoped memory for tpu_custom_call.1']
    #allocation4 [shape = 's32[1]{0}', space=sflag, size = 0x4, scoped, tag = 'scoped memory for tpu_custom_call.1']
    #allocation5 [shape = 'u8[8192]{0}', space=vmem, size = 0x2000, scoped, tag = 'output window, operand 0, single buffered']
    %6 = vsyncpa [#allocation3], 0
    %7 = vsyncpa [#allocation4], 0
    // Predicated region
    $region2: #{tpu_custom_call.1} parent=1 // pred_check
      _
    $region3: #{tpu_custom_call.1} parent=1 // pred_check_branch
      %9 = sbr.rel (0) target = $region5
    $region4: #{tpu_custom_call.1} parent=1 // pred_region
      %11 = vsyncadd [#allocation3], 0
      %s13 = sshll.u32 %s0, 4
      %s14 = int_to_ptr.hbm [resolvable:$true] %s13
      %s15 = sshll.u32 [#allocation2], 4
      %s16 = int_to_ptr.vmem [resolvable:$true] %s15
      %18 = dma.hbm_to_vmem [thread:$0]  %s14, 256, %s16, [#allocation3]
    $region5: #{tpu_custom_call.1} parent=1 // pred_fallthru
      _
    // Predicated region
    $region6: #{tpu_custom_call.1} parent=1 // pred_check
      _
    $region7: #{tpu_custom_call.1} parent=1 // pred_check_branch
      %20 = sbr.rel (0) target = $region9
    $region8: #{tpu_custom_call.1} parent=1 // pred_region
      %22 = dma.done [#allocation3], 256
    $region9: #{tpu_custom_call.1} parent=1 // pred_fallthru
      _
    %v23 = vld [vmem:[#allocation2] sm:$0xff]
    %v24 = vld [vmem:[#allocation2 + $0x8] sm:$0xff]
    %25 = vst [vmem:[#allocation5] sm:$0xff] %v23
    %26 = vst [vmem:[#allocation5 + $0x8] sm:$0xff] %v24
    // Predicated region
    $region10: #{tpu_custom_call.1} parent=1 // pred_check
      _
    $region11: #{tpu_custom_call.1} parent=1 // pred_check_branch
      %28 = sbr.rel (0) target = $region13
    $region12: #{tpu_custom_call.1} parent=1 // pred_region
      %30 = vsyncadd [#allocation4], 0
      %s32 = sshll.u32 [#allocation5], 4
      %s33 = int_to_ptr.vmem [resolvable:$true] %s32
      %s34 = sshll.u32 %s1, 4
      %s35 = int_to_ptr.hbm [resolvable:$true] %s34
      %37 = dma.vmem_to_hbm [thread:$0]  %s33, 256, %s35, [#allocation4]
    $region13: #{tpu_custom_call.1} parent=1 // pred_fallthru
      _
    // Predicated region
    $region14: #{tpu_custom_call.1} parent=1 // pred_check
      _
    $region15: #{tpu_custom_call.1} parent=1 // pred_check_branch
      %39 = sbr.rel (0) target = $region17
    $region16: #{tpu_custom_call.1} parent=1 // pred_region
      %41 = dma.done [#allocation4], 256
    $region17: #{tpu_custom_call.1} parent=1 // pred_fallthru
      _
    %42 = vsyncpa [#allocation3], 1
    %43 = vsyncpa [#allocation4], 1

</llo_original>
